<compile_context>
chip_gen: v7x
topology: tpu7x:2x2x1
jax: 0.10.0
libtpu: 0.0.40
codegen_flags: <defaults>
</compile_context>

<pallas_src>
import functools

import jax
import jax.numpy as jnp
from jax.experimental import pallas as pl
from jax.experimental.pallas import tpu as pltpu

BN_EPS = 1e-5
LEAKY_SLOPE = 0.01  # nn.LeakyReLU() default


def _round_up(a, b):
    return ((a + b - 1) // b) * b


def encoder_kernel(ar_ref, ai_ref, br_ref, bi_ref, o_ref, sum_ref, ssq_ref, *, m_true):
    # grid = (channel_tiles, phase, m_tiles)
    #   phase 0: matmul tile -> accumulate per-column sum / sumsq (batch stats)
    #   phase 1: recompute matmul tile -> normalize (biased var, eps) -> LeakyReLU -> store
    p = pl.program_id(1)
    m = pl.program_id(2)

    # Complex conv packed into one lane-dense matrix product:
    #   y = [c_real | c_im] = a_r @ [Wr | Wi] + a_i @ [-Wi | Wr]
    # bf16 operands, f32 accumulation on the MXU.
    y = (jnp.dot(ar_ref[...], br_ref[...], preferred_element_type=jnp.float32) +
         jnp.dot(ai_ref[...], bi_ref[...], preferred_element_type=jnp.float32))

    @pl.when(jnp.logical_and(p == 0, m == 0))
    def _():
        sum_ref[...] = jnp.zeros_like(sum_ref)
        ssq_ref[...] = jnp.zeros_like(ssq_ref)

    @pl.when(p == 0)
    def _():
        # zero-padded rows of a_r/a_i contribute nothing to the per-column stats
        sum_ref[...] += jnp.sum(y, axis=0, keepdims=True)
        ssq_ref[...] += jnp.sum(y * y, axis=0, keepdims=True)

    @pl.when(p == 1)
    def _():
        inv_n = 1.0 / float(m_true)
        mean = sum_ref[...] * inv_n
        var = ssq_ref[...] * inv_n - mean * mean  # biased variance (training-mode BN)
        yn = (y - mean) * jax.lax.rsqrt(var + BN_EPS)
        o_ref[...] = jnp.where(yn >= 0, yn, LEAKY_SLOPE * yn)


def im2col(x, kh, kw, sh, sw):
    # x: [N, C, H, W]  ->  patches: [N*OH*OW, C*kh*kw]
    N, C, H, W = x.shape
    oh = (H - kh) // sh + 1
    ow = (W - kw) // sw + 1
    idx_h = (jnp.arange(oh) * sh)[:, None] + jnp.arange(kh)[None, :]   # [oh, kh]
    idx_w = (jnp.arange(ow) * sw)[:, None] + jnp.arange(kw)[None, :]   # [ow, kw]
    p = x[:, :, idx_h, :]                 # [N, C, oh, kh, W]
    p = p[:, :, :, :, idx_w]              # [N, C, oh, kh, ow, kw]
    p = p.transpose(0, 2, 4, 1, 3, 5)     # [N, oh, ow, C, kh, kw]
    return p.reshape(N * oh * ow, C * kh * kw), oh, ow


def xavier_uniform(key, shape):
    # shape = (Cout, Cin, KH, KW); gain = 1
    cout, cin, kh, kw = shape
    fan_in = cin * kh * kw
    fan_out = cout * kh * kw
    bound = (6.0 / (fan_in + fan_out)) ** 0.5
    return jax.random.uniform(key, shape, jnp.float32, -bound, bound)


def init_encoder_params(key, in_channels, out_channels, filter_size):
    kh, kw = filter_size
    k_wr, k_wi, k_br, k_bi = jax.random.split(key, 4)
    w_real = xavier_uniform(k_wr, (out_channels, in_channels, kh, kw))
    w_im = xavier_uniform(k_wi, (out_channels, in_channels, kh, kw))
    # PyTorch Conv2d default bias init (kept for parameter parity; forward output is
    # independent of the conv bias because training-mode BN cancels per-channel constants).
    fan_in = in_channels * kh * kw
    bb = 1.0 / (fan_in ** 0.5)
    b_real = jax.random.uniform(k_br, (out_channels,), jnp.float32, -bb, bb)
    b_im = jax.random.uniform(k_bi, (out_channels,), jnp.float32, -bb, bb)
    return dict(w_real=w_real, w_im=w_im, b_real=b_real, b_im=b_im)


def encoder_forward(x, params, filter_size=(7, 5), stride_size=(2, 2)):
    """x: [N, Cin, H, W, 2] float32 -> [N, Cout, OH, OW, 2] float32"""
    kh, kw = filter_size
    sh, sw = stride_size
    N = x.shape[0]
    x_real = x[..., 0]
    x_im = x[..., 1]

    a_r, oh, ow = im2col(x_real, kh, kw, sh, sw)   # [M, K]
    a_i, _, _ = im2col(x_im, kh, kw, sh, sw)       # [M, K]
    M, K = a_r.shape
    cout = params["w_real"].shape[0]
    C2 = 2 * cout

    Wr = params["w_real"].reshape(cout, K).T       # [K, Cout]
    Wi = params["w_im"].reshape(cout, K).T         # [K, Cout]
    B_r = jnp.concatenate([Wr, Wi], axis=1)        # multiplies a_r -> [c_real | c_im]
    B_i = jnp.concatenate([-Wi, Wr], axis=1)       # multiplies a_i
    # Conv bias omitted: BN with batch statistics (gamma=1, beta=0) exactly cancels any
    # per-column constant, so the forward output is unchanged.
    # TODO(synk): re-add the per-column bias ([b_real - b_im | b_real + b_im]) if BN is
    #             switched to eval mode / running statistics.

    # Tiling: lane-dense output (pad 2*Cout -> multiple of 128); M tiled in multiples of 16.
    TC = 128
    C2p = _round_up(C2, TC)
    TM = min(512, _round_up(M, 16))
    Mp = _round_up(M, TM)

    def pad_cast(a, rows, cols):
        return jnp.pad(a, ((0, rows - a.shape[0]), (0, cols - a.shape[1]))).astype(jnp.bfloat16)

    a_r_p = pad_cast(a_r, Mp, K)
    a_i_p = pad_cast(a_i, Mp, K)
    b_r_p = pad_cast(B_r, K, C2p)
    b_i_p = pad_cast(B_i, K, C2p)

    c_tiles = C2p // TC
    m_tiles = Mp // TM
    grid = (c_tiles, 2, m_tiles)

    # VMEM budget: double-buffered input blocks + output block + stats scratch, with headroom.
    bytes_per_step = (2 * TM * K * 2      # a_r + a_i blocks (bf16)
                      + 2 * K * TC * 2    # B_r + B_i blocks (bf16)
                      + TM * TC * 4)      # output block (f32)
    vmem_limit = int(min(64 * 2**20, max(16 * 2**20, 4 * bytes_per_step + 2 * 2**20)))

    out = pl.pallas_call(
        functools.partial(encoder_kernel, m_true=M),
        out_shape=jax.ShapeDtypeStruct((Mp, C2p), jnp.float32),
        grid=grid,
        in_specs=[
            pl.BlockSpec((TM, K), lambda c, p, m: (m, 0)),
            pl.BlockSpec((TM, K), lambda c, p, m: (m, 0)),
            pl.BlockSpec((K, TC), lambda c, p, m: (0, c)),
            pl.BlockSpec((K, TC), lambda c, p, m: (0, c)),
        ],
        # Phase 0 parks the output window on block (0, c) (never written there); phase 1
        # visits each (m, c) block exactly once and fully overwrites it -> one clean
        # lane-dense writeback per block.
        out_specs=pl.BlockSpec((TM, TC), lambda c, p, m: (m * p, c)),
        scratch_shapes=[
            pltpu.VMEM((1, TC), jnp.float32),   # per-column sum
            pltpu.VMEM((1, TC), jnp.float32),   # per-column sum of squares
        ],
        compiler_params=pltpu.CompilerParams(
            dimension_semantics=("parallel", "arbitrary", "arbitrary"),
            vmem_limit_bytes=vmem_limit,
        ),
    )(a_r_p, a_i_p, b_r_p, b_i_p)

    # [Mp, C2p] -> [N, Cout, OH, OW, 2]; columns are [real channels | imag channels].
    y = out[:M, :C2].reshape(N, oh, ow, 2, cout)
    return y.transpose(0, 4, 1, 2, 3)


if __name__ == "__main__":
    key = jax.random.PRNGKey(0)
    k_param, k_x = jax.random.split(key)

    in_channels, out_channels = 1, 45
    filter_size, stride_size = (7, 5), (2, 2)
    N, H, W = 2, 16, 16

    params = init_encoder_params(k_param, in_channels, out_channels, filter_size)
    x = jax.random.normal(k_x, (N, in_channels, H, W, 2), dtype=jnp.float32)

    fwd = jax.jit(functools.partial(encoder_forward,
                                    filter_size=filter_size,
                                    stride_size=stride_size))
    y = fwd(x, params)
    y = jax.block_until_ready(y)

    # torch semantics: OH=(16-7)//2+1=5, OW=(16-5)//2+1=6
    assert y.shape == (N, out_channels, 5, 6, 2), y.shape
    assert bool(jnp.all(jnp.isfinite(y)))
    print("KERNEL_OK")
</pallas_src>

<mosaic_0001>
module attributes {stable_mosaic.version = 11 : i64} {
  func.func @encoder_kernel(%arg0: i32, %arg1: i32, %arg2: i32, %arg3: memref<64x35xbf16, #tpu.memory_space<vmem>>, %arg4: memref<64x35xbf16, #tpu.memory_space<vmem>>, %arg5: memref<35x128xbf16, #tpu.memory_space<vmem>>, %arg6: memref<35x128xbf16, #tpu.memory_space<vmem>>, %arg7: memref<64x128xf32, #tpu.memory_space<vmem>>, %arg8: memref<1x128xf32, #tpu.memory_space<vmem>>, %arg9: memref<1x128xf32, #tpu.memory_space<vmem>>) attributes {dimension_semantics = [#tpu.dimension_semantics<parallel>, #tpu.dimension_semantics<arbitrary>, #tpu.dimension_semantics<arbitrary>], iteration_bounds = array<i64: 1, 2, 1>, scalar_prefetch = 0 : i64, scratch_operands = 2 : i64, tpu.core_type = #tpu.core_type<tc>, window_params = [{transform_indices = @transform_0, window_bounds = array<i64: 64, 35>}, {transform_indices = @transform_1, window_bounds = array<i64: 64, 35>}, {transform_indices = @transform_2, window_bounds = array<i64: 35, 128>}, {transform_indices = @transform_3, window_bounds = array<i64: 35, 128>}, {transform_indices = @transform_4, window_bounds = array<i64: 64, 128>}]} {
    %c0 = arith.constant 0 : index
    %c0_0 = arith.constant 0 : index
    %0 = vector.load %arg3[%c0, %c0_0] : memref<64x35xbf16, #tpu.memory_space<vmem>>, vector<64x35xbf16>
    %c0_1 = arith.constant 0 : index
    %c0_2 = arith.constant 0 : index
    %1 = vector.load %arg5[%c0_1, %c0_2] : memref<35x128xbf16, #tpu.memory_space<vmem>>, vector<35x128xbf16>
    %cst = arith.constant dense<0.000000e+00> : vector<64x128xf32>
    %2 = tpu.matmul %0, %1, %cst {dimension_numbers = #tpu.dot_dimension_numbers<[1], [0], [0], [1], [0, 0, 1, 1], [], []>} : vector<64x35xbf16>, vector<35x128xbf16>, vector<64x128xf32> -> vector<64x128xf32>
    %c0_3 = arith.constant 0 : index
    %c0_4 = arith.constant 0 : index
    %3 = vector.load %arg4[%c0_3, %c0_4] : memref<64x35xbf16, #tpu.memory_space<vmem>>, vector<64x35xbf16>
    %c0_5 = arith.constant 0 : index
    %c0_6 = arith.constant 0 : index
    %4 = vector.load %arg6[%c0_5, %c0_6] : memref<35x128xbf16, #tpu.memory_space<vmem>>, vector<35x128xbf16>
    %cst_7 = arith.constant dense<0.000000e+00> : vector<64x128xf32>
    %5 = tpu.matmul %3, %4, %cst_7 {dimension_numbers = #tpu.dot_dimension_numbers<[1], [0], [0], [1], [0, 0, 1, 1], [], []>} : vector<64x35xbf16>, vector<35x128xbf16>, vector<64x128xf32> -> vector<64x128xf32>
    %6 = arith.addf %2, %5 : vector<64x128xf32>
    %c0_i32 = arith.constant 0 : i32
    %7 = arith.cmpi eq, %arg1, %c0_i32 : i32
    %c0_i32_8 = arith.constant 0 : i32
    %8 = arith.cmpi eq, %arg2, %c0_i32_8 : i32
    %9 = arith.andi %7, %8 : i1
    %10 = arith.extui %9 : i1 to i32
    %c0_i32_9 = arith.constant 0 : i32
    %11 = arith.cmpi ne, %10, %c0_i32_9 : i32
    scf.if %11 {
      %cst_13 = arith.constant 0.000000e+00 : f32
      %18 = vector.broadcast %cst_13 : f32 to vector<1x128xf32>
      %c0_14 = arith.constant 0 : index
      %c0_15 = arith.constant 0 : index
      %19 = vector.load %arg8[%c0_14, %c0_15] : memref<1x128xf32, #tpu.memory_space<vmem>>, vector<1x128xf32>
      tpu.vector_store %arg8[%c0_14, %c0_15], %18 {strides = array<i32>} : memref<1x128xf32, #tpu.memory_space<vmem>>, vector<1x128xf32>,
      %cst_16 = arith.constant 0.000000e+00 : f32
      %20 = vector.broadcast %cst_16 : f32 to vector<1x128xf32>
      %c0_17 = arith.constant 0 : index
      %c0_18 = arith.constant 0 : index
      %21 = vector.load %arg9[%c0_17, %c0_18] : memref<1x128xf32, #tpu.memory_space<vmem>>, vector<1x128xf32>
      tpu.vector_store %arg9[%c0_17, %c0_18], %20 {strides = array<i32>} : memref<1x128xf32, #tpu.memory_space<vmem>>, vector<1x128xf32>,
    } else {
    }
    %c0_i32_10 = arith.constant 0 : i32
    %12 = arith.cmpi eq, %arg1, %c0_i32_10 : i32
    %13 = arith.extui %12 : i1 to i32
    %c0_i32_11 = arith.constant 0 : i32
    %14 = arith.cmpi ne, %13, %c0_i32_11 : i32
    scf.if %14 {
      %c0_13 = arith.constant 0 : index
      %c0_14 = arith.constant 0 : index
      %18 = vector.load %arg8[%c0_13, %c0_14] : memref<1x128xf32, #tpu.memory_space<vmem>>, vector<1x128xf32>
      %cst_15 = arith.constant dense<0.000000e+00> : vector<128xf32>
      %19 = vector.multi_reduction <add>, %6, %cst_15 [0] : vector<64x128xf32> to vector<128xf32>
      %20 = vector.shape_cast %19 : vector<128xf32> to vector<1x128xf32>
      %21 = arith.addf %18, %20 : vector<1x128xf32>
      %c0_16 = arith.constant 0 : index
      %c0_17 = arith.constant 0 : index
      %22 = vector.load %arg8[%c0_16, %c0_17] : memref<1x128xf32, #tpu.memory_space<vmem>>, vector<1x128xf32>
      tpu.vector_store %arg8[%c0_16, %c0_17], %21 {strides = array<i32>} : memref<1x128xf32, #tpu.memory_space<vmem>>, vector<1x128xf32>,
      %c0_18 = arith.constant 0 : index
      %c0_19 = arith.constant 0 : index
      %23 = vector.load %arg9[%c0_18, %c0_19] : memref<1x128xf32, #tpu.memory_space<vmem>>, vector<1x128xf32>
      %24 = arith.mulf %6, %6 : vector<64x128xf32>
      %cst_20 = arith.constant dense<0.000000e+00> : vector<128xf32>
      %25 = vector.multi_reduction <add>, %24, %cst_20 [0] : vector<64x128xf32> to vector<128xf32>
      %26 = vector.shape_cast %25 : vector<128xf32> to vector<1x128xf32>
      %27 = arith.addf %23, %26 : vector<1x128xf32>
      %c0_21 = arith.constant 0 : index
      %c0_22 = arith.constant 0 : index
      %28 = vector.load %arg9[%c0_21, %c0_22] : memref<1x128xf32, #tpu.memory_space<vmem>>, vector<1x128xf32>
      tpu.vector_store %arg9[%c0_21, %c0_22], %27 {strides = array<i32>} : memref<1x128xf32, #tpu.memory_space<vmem>>, vector<1x128xf32>,
    } else {
    }
    %c1_i32 = arith.constant 1 : i32
    %15 = arith.cmpi eq, %arg1, %c1_i32 : i32
    %16 = arith.extui %15 : i1 to i32
    %c0_i32_12 = arith.constant 0 : i32
    %17 = arith.cmpi ne, %16, %c0_i32_12 : i32
    scf.if %17 {
      %c0_13 = arith.constant 0 : index
      %c0_14 = arith.constant 0 : index
      %18 = vector.load %arg8[%c0_13, %c0_14] : memref<1x128xf32, #tpu.memory_space<vmem>>, vector<1x128xf32>
      %cst_15 = arith.constant 0.0166666675 : f32
      %19 = vector.broadcast %cst_15 : f32 to vector<1x128xf32>
      %20 = arith.mulf %18, %19 : vector<1x128xf32>
      %c0_16 = arith.constant 0 : index
      %c0_17 = arith.constant 0 : index
      %21 = vector.load %arg9[%c0_16, %c0_17] : memref<1x128xf32, #tpu.memory_space<vmem>>, vector<1x128xf32>
      %cst_18 = arith.constant 0.0166666675 : f32
      %22 = vector.broadcast %cst_18 : f32 to vector<1x128xf32>
      %23 = arith.mulf %21, %22 : vector<1x128xf32>
      %24 = arith.mulf %20, %20 : vector<1x128xf32>
      %25 = arith.subf %23, %24 : vector<1x128xf32>
      %26 = vector.broadcast %20 : vector<1x128xf32> to vector<64x128xf32>
      %27 = arith.subf %6, %26 : vector<64x128xf32>
      %cst_19 = arith.constant 9.99999974E-6 : f32
      %28 = vector.broadcast %cst_19 : f32 to vector<1x128xf32>
      %29 = arith.addf %25, %28 : vector<1x128xf32>
      %30 = math.rsqrt %29 : vector<1x128xf32>
      %31 = vector.broadcast %30 : vector<1x128xf32> to vector<64x128xf32>
      %32 = arith.mulf %27, %31 : vector<64x128xf32>
      %cst_20 = arith.constant 0.000000e+00 : f32
      %33 = vector.broadcast %cst_20 : f32 to vector<64x128xf32>
      %34 = arith.cmpf oge, %32, %33 : vector<64x128xf32>
      %cst_21 = arith.constant 0.00999999977 : f32
      %35 = vector.broadcast %cst_21 : f32 to vector<64x128xf32>
      %36 = arith.mulf %35, %32 : vector<64x128xf32>
      %37 = arith.select %34, %32, %36 : vector<64x128xi1>, vector<64x128xf32>
      %c0_22 = arith.constant 0 : index
      %c0_23 = arith.constant 0 : index
      %38 = vector.load %arg7[%c0_22, %c0_23] : memref<64x128xf32, #tpu.memory_space<vmem>>, vector<64x128xf32>
      tpu.vector_store %arg7[%c0_22, %c0_23], %37 {strides = array<i32>} : memref<64x128xf32, #tpu.memory_space<vmem>>, vector<64x128xf32>,
    } else {
    }
    return
  }
  func.func @transform_0(%arg0: i32, %arg1: i32, %arg2: i32) -> (i32, i32) {
    %c0_i32 = arith.constant 0 : i32
    %c0_i32_0 = arith.constant 0 : i32
    return %arg2, %c0_i32 : i32, i32
  }
  func.func @transform_1(%arg0: i32, %arg1: i32, %arg2: i32) -> (i32, i32) {
    %c0_i32 = arith.constant 0 : i32
    %c0_i32_0 = arith.constant 0 : i32
    return %arg2, %c0_i32 : i32, i32
  }
  func.func @transform_2(%arg0: i32, %arg1: i32, %arg2: i32) -> (i32, i32) {
    %c0_i32 = arith.constant 0 : i32
    %c0_i32_0 = arith.constant 0 : i32
    return %c0_i32, %arg0 : i32, i32
  }
  func.func @transform_3(%arg0: i32, %arg1: i32, %arg2: i32) -> (i32, i32) {
    %c0_i32 = arith.constant 0 : i32
    %c0_i32_0 = arith.constant 0 : i32
    return %c0_i32, %arg0 : i32, i32
  }
  func.func @transform_4(%arg0: i32, %arg1: i32, %arg2: i32) -> (i32, i32) {
    %0 = arith.muli %arg2, %arg1 : i32
    %c0_i32 = arith.constant 0 : i32
    return %0, %arg0 : i32, i32
  }
}

</mosaic_0001>

<llo_original>
// kernel: encoder_forward.1
$region0: #{encoder_forward.1}
  #allocation0 [shape = 'u32[]', space=smem, size = 0x4, offset = 0x4, fixed_abs, tag = 'smem constant byte address 0x4 - core index']
  #allocation1 [shape = 'u32[144,128]{1,0:T(1,128)}', space=vmem, size = 0x12000, scoped, tag = 'internal scratch']
  #allocation2 [shape = 'f32[1,128]{1,0:T(1,128)}', space=vmem, size = 0x200, scoped, tag = 'scratch operand']
  #allocation3 [shape = 'f32[1,128]{1,0:T(1,128)}', space=vmem, size = 0x200, scoped, tag = 'scratch operand']
  %s0 = inlined_call_operand.vmem [shape: bf16[64,35], index: 0, kind: input, shape index: {}]
  %s1 = inlined_call_operand.vmem [shape: bf16[64,35], index: 1, kind: input, shape index: {}]
  %s2 = inlined_call_operand.vmem [shape: bf16[35,128], index: 2, kind: input, shape index: {}]
  %s3 = inlined_call_operand.vmem [shape: bf16[35,128], index: 3, kind: input, shape index: {}]
  %s4 = inlined_call_operand.vmem [shape: f32[64,128], index: 4, kind: output, shape index: {}]
  %s5 = sld [smem:[#allocation0]]
  $region61: #{encoder_forward.1} parent=0
    _
  %s7 = ssub.s32 1, %s5
  %s8 = scalar_select 0, %s7, %s5
  loop: start=0, step=1, limit=4
  $region2: #{encoder_forward.1} parent=0 // loop_pre_header
    _
  $region3: #{encoder_forward.1} parent=0 // loop_header
    %s10 = sphi 0, %s14
    %p11 = scmp.ge.s32.totalorder %s10, 4
    %s17 = sphi 0, %s36
    %s18 = sphi 0, %s32
    %s19 = sphi 0, %s28
    %s20 = sphi 0, %s17
    %s21 = sphi 0, %s18
    %s22 = sphi 0, %s19
    %s23 = sphi 0, %s20
    %s24 = sphi 0, %s21
    %s25 = sphi 0, %s22
    %s39 = sphi 0, %s41
    %s42 = sphi 0, %s39
    %s43 = sphi 0, %s42
    %s59 = sphi 0, %s43
    %s65 = sphi 0, %s67
    %s68 = sphi 0, %s65
    %s69 = sphi 0, %s68
    %s85 = sphi 0, %s69
    %s91 = sphi 0, %s93
    %s94 = sphi 0, %s91
    %s95 = sphi 0, %s94
    %s111 = sphi 0, %s95
    %s117 = sphi 0, %s119
    %s120 = sphi 0, %s117
    %s121 = sphi 0, %s120
    %s137 = sphi 0, %s121
    %s147 = sphi 0, %s149
    %s150 = sphi 0, %s147
    %s151 = sphi 0, %s150
    %s167 = sphi 0, %s151
  $region4: #{encoder_forward.1} parent=0 // loop_header_branch
    %13 = sbr.rel (%p11) target = $region8
  $region5: #{encoder_forward.1} parent=0 // loop_body
    %s15 = ssub.s32 %s10, 1
    %s16 = ssub.s32 %s10, 2
    %s26 = sadd.s32 1, %s19
    %p27 = scmp.ge.s32.totalorder %s26, 1
    %s28 = scalar_select %p27, 0, %s26
    %s29 = sadd.s32 1, %s18
    %s30 = scalar_select %p27, %s29, %s18
    %p31 = scmp.ge.s32.totalorder %s30, 2
    %s32 = scalar_select %p31, 0, %s30
    %s33 = sadd.s32 1, %s17
    %s34 = scalar_select %p31, %s33, %s17
    %p35 = scmp.ge.s32.totalorder %s34, 1
    %s36 = scalar_select %p35, 0, %s34
    %s37 = ssub.s32 %s19, %s28
    %p38 = scmp.eq.s32.totalorder %s37, 0
    %s40 = sadd.s32 %s39, 1
    %s41 = scalar_select %p38, %s39, %s40
    %p44 = pneg %p38
    %p45 = scmp.eq.s32.totalorder %s10, 1
    %p46 = por %p44, %p45
    %p47 = scmp.ne.s32.totalorder %s39, %s42
    %p48 = scmp.eq.s32.totalorder %s10, 0
    %p49 = por %p47, %p48
    %p50 = scmp.ne.s32.totalorder %s39, %s42
    %p51 = scmp.eq.s32.totalorder %s15, 1
    %p52 = por %p50, %p51
    %p53 = scmp.ne.s32.totalorder %s42, %s43
    %p54 = scmp.eq.s32.totalorder %s15, 0
    %p55 = por %p53, %p54
    %p56 = scmp.ne.s32.totalorder %s42, %s43
    %p57 = scmp.eq.s32.totalorder %s16, 1
    %p58 = por %p56, %p57
    %p60 = scmp.ne.s32.totalorder %s43, %s59
    %p61 = scmp.eq.s32.totalorder %s16, 0
    %p62 = por %p60, %p61
    %s63 = ssub.s32 %s19, %s28
    %p64 = scmp.eq.s32.totalorder %s63, 0
    %s66 = sadd.s32 %s65, 1
    %s67 = scalar_select %p64, %s65, %s66
    %p70 = pneg %p64
    %p71 = scmp.eq.s32.totalorder %s10, 1
    %p72 = por %p70, %p71
    %p73 = scmp.ne.s32.totalorder %s65, %s68
    %p74 = scmp.eq.s32.totalorder %s10, 0
    %p75 = por %p73, %p74
    %p76 = scmp.ne.s32.totalorder %s65, %s68
    %p77 = scmp.eq.s32.totalorder %s15, 1
    %p78 = por %p76, %p77
    %p79 = scmp.ne.s32.totalorder %s68, %s69
    %p80 = scmp.eq.s32.totalorder %s15, 0
    %p81 = por %p79, %p80
    %p82 = scmp.ne.s32.totalorder %s68, %s69
    %p83 = scmp.eq.s32.totalorder %s16, 1
    %p84 = por %p82, %p83
    %p86 = scmp.ne.s32.totalorder %s69, %s85
    %p87 = scmp.eq.s32.totalorder %s16, 0
    %p88 = por %p86, %p87
    %s89 = ssub.s32 %s17, %s36
    %p90 = scmp.eq.s32.totalorder %s89, 0
    %s92 = sadd.s32 %s91, 1
    %s93 = scalar_select %p90, %s91, %s92
    %p96 = pneg %p90
    %p97 = scmp.eq.s32.totalorder %s10, 1
    %p98 = por %p96, %p97
    %p99 = scmp.ne.s32.totalorder %s91, %s94
    %p100 = scmp.eq.s32.totalorder %s10, 0
    %p101 = por %p99, %p100
    %p102 = scmp.ne.s32.totalorder %s91, %s94
    %p103 = scmp.eq.s32.totalorder %s15, 1
    %p104 = por %p102, %p103
    %p105 = scmp.ne.s32.totalorder %s94, %s95
    %p106 = scmp.eq.s32.totalorder %s15, 0
    %p107 = por %p105, %p106
    %p108 = scmp.ne.s32.totalorder %s94, %s95
    %p109 = scmp.eq.s32.totalorder %s16, 1
    %p110 = por %p108, %p109
    %p112 = scmp.ne.s32.totalorder %s95, %s111
    %p113 = scmp.eq.s32.totalorder %s16, 0
    %p114 = por %p112, %p113
    %s115 = ssub.s32 %s17, %s36
    %p116 = scmp.eq.s32.totalorder %s115, 0
    %s118 = sadd.s32 %s117, 1
    %s119 = scalar_select %p116, %s117, %s118
    %p122 = pneg %p116
    %p123 = scmp.eq.s32.totalorder %s10, 1
    %p124 = por %p122, %p123
    %p125 = scmp.ne.s32.totalorder %s117, %s120
    %p126 = scmp.eq.s32.totalorder %s10, 0
    %p127 = por %p125, %p126
    %p128 = scmp.ne.s32.totalorder %s117, %s120
    %p129 = scmp.eq.s32.totalorder %s15, 1
    %p130 = por %p128, %p129
    %p131 = scmp.ne.s32.totalorder %s120, %s121
    %p132 = scmp.eq.s32.totalorder %s15, 0
    %p133 = por %p131, %p132
    %p134 = scmp.ne.s32.totalorder %s120, %s121
    %p135 = scmp.eq.s32.totalorder %s16, 1
    %p136 = por %p134, %p135
    %p138 = scmp.ne.s32.totalorder %s121, %s137
    %p139 = scmp.eq.s32.totalorder %s16, 0
    %p140 = por %p138, %p139
    %s141 = smul.u32 %s19, %s18
    %s142 = smul.u32 %s28, %s32
    %s143 = ssub.s32 %s141, %s142
    %s144 = ssub.s32 %s17, %s36
    %s145 = sor.u32 %s143, %s144
    %p146 = scmp.eq.s32.totalorder %s145, 0
    %s148 = sadd.s32 %s147, 1
    %s149 = scalar_select %p146, %s147, %s148
    %p152 = pneg %p146
    %p153 = scmp.eq.s32.totalorder %s10, 1
    %p154 = por %p152, %p153
    %p155 = scmp.ne.s32.totalorder %s147, %s150
    %p156 = scmp.eq.s32.totalorder %s10, 0
    %p157 = por %p155, %p156
    %p158 = scmp.ne.s32.totalorder %s147, %s150
    %p159 = scmp.eq.s32.totalorder %s15, 1
    %p160 = por %p158, %p159
    %p161 = scmp.ne.s32.totalorder %s150, %s151
    %p162 = scmp.eq.s32.totalorder %s15, 0
    %p163 = por %p161, %p162
    %p164 = scmp.ne.s32.totalorder %s150, %s151
    %p165 = scmp.eq.s32.totalorder %s16, 1
    %p166 = por %p164, %p165
    %p168 = scmp.ne.s32.totalorder %s151, %s167
    %p169 = scmp.eq.s32.totalorder %s16, 0
    %p170 = por %p168, %p169
    %p171 = scmp.le.s32.totalorder 1, %s10
    %p172 = scmp.lt.s32.totalorder %s10, 3
    %p173 = pnand %p171, %p172
    %p174 = pneg %p173
    // Predicated region
    $region9: #{encoder_forward.1} parent=5 // pred_check
      _
    $region10: #{encoder_forward.1} parent=5 // pred_check_branch
      %176 = sbr.rel (%p173) target = $region12
    $region11: #{encoder_forward.1} parent=5 // pred_region
      %s177 = ssub.s32 %s10, 1
      // Predicated region
      $region13: #{encoder_forward.1} parent=11 // pred_check
        %p178 = pneg %p55
      $region14: #{encoder_forward.1} parent=11 // pred_check_branch
        %180 = sbr.rel (%p178) target = $region16
      $region15: #{encoder_forward.1} parent=11 // pred_region
        %s181 = smul.u32 8, %s22
        %p182 = scmp.lt.s32.totalorder %s181, 7
        %s183 = scalar_select %p182, %s181, 7
        %s184 = smul.addr %s183, 4
        %s185 = scalar_lea.vmem %s0, %s184
        %s186 = smul.u32 8, %s22
      $region16: #{encoder_forward.1} parent=11 // pred_fallthru
        _
      // Predicated region
      $region17: #{encoder_forward.1} parent=11 // pred_check
        %p187 = pneg %p81
      $region18: #{encoder_forward.1} parent=11 // pred_check_branch
        %189 = sbr.rel (%p187) target = $region20
      $region19: #{encoder_forward.1} parent=11 // pred_region
        %s190 = smul.u32 8, %s22
        %p191 = scmp.lt.s32.totalorder %s190, 7
        %s192 = scalar_select %p191, %s190, 7
        %s193 = smul.addr %s192, 4
        %s194 = scalar_lea.vmem %s1, %s193
        %s195 = smul.u32 8, %s22
      $region20: #{encoder_forward.1} parent=11 // pred_fallthru
        _
      // Predicated region
      $region21: #{encoder_forward.1} parent=11 // pred_check
        %p196 = pneg %p107
      $region22: #{encoder_forward.1} parent=11 // pred_check_branch
        %198 = sbr.rel (%p196) target = $region24
      $region23: #{encoder_forward.1} parent=11 // pred_region
        %p199 = scmp.lt.s32.totalorder %s20, 0
        %s200 = scalar_select %p199, %s20, 0
        %s201 = smul.addr %s200, 4
        %s202 = scalar_lea.vmem %s2, %s201
      $region24: #{encoder_forward.1} parent=11 // pred_fallthru
        _
      // Predicated region
      $region25: #{encoder_forward.1} parent=11 // pred_check
        %p203 = pneg %p133
      $region26: #{encoder_forward.1} parent=11 // pred_check_branch
        %205 = sbr.rel (%p203) target = $region28
      $region27: #{encoder_forward.1} parent=11 // pred_region
        %p206 = scmp.lt.s32.totalorder %s20, 0
        %s207 = scalar_select %p206, %s20, 0
        %s208 = smul.addr %s207, 4
        %s209 = scalar_lea.vmem %s3, %s208
      $region28: #{encoder_forward.1} parent=11 // pred_fallthru
        _
    $region12: #{encoder_forward.1} parent=5 // pred_fallthru
      _
    %p210 = scmp.lt.s32.totalorder %s10, 2
    // Predicated region
    $region29: #{encoder_forward.1} parent=5 // pred_check
      %p211 = pneg %p210
    $region30: #{encoder_forward.1} parent=5 // pred_check_branch
      %213 = sbr.rel (%p211) target = $region32
    $region31: #{encoder_forward.1} parent=5 // pred_region
      _
    $region32: #{encoder_forward.1} parent=5 // pred_fallthru
      _
    %p214 = scmp.le.s32.totalorder 1, %s10
    %p215 = scmp.lt.s32.totalorder %s10, 3
    %p216 = pnand %p214, %p215
    %p217 = pneg %p216
    // Predicated region
    $region33: #{encoder_forward.1} parent=5 // pred_check
      _
    $region34: #{encoder_forward.1} parent=5 // pred_check_branch
      %219 = sbr.rel (%p216) target = $region36
    $region35: #{encoder_forward.1} parent=5 // pred_region
      %s220 = ssub.s32 %s10, 1
      %s221 = smul.u32 8, %s22
      %p222 = scmp.lt.s32.totalorder %s221, 7
      %s223 = scalar_select %p222, %s221, 7
      %s224 = smul.addr %s223, 4
      %s225 = scalar_lea.vmem %s0, %s224
      %p226 = pneg %p55
      %p227 = pneg %p52
      %s228 = smul.u32 8, %s22
      %p229 = scmp.lt.s32.totalorder %s228, 7
      %s230 = scalar_select %p229, %s228, 7
      %s231 = smul.addr %s230, 4
      %s232 = scalar_lea.vmem %s1, %s231
      %p233 = pneg %p81
      %p234 = pneg %p78
      %p235 = scmp.lt.s32.totalorder %s20, 0
      %s236 = scalar_select %p235, %s20, 0
      %s237 = smul.addr %s236, 4
      %s238 = scalar_lea.vmem %s2, %s237
      %p239 = pneg %p107
      %p240 = pneg %p104
      %p241 = scmp.lt.s32.totalorder %s20, 0
      %s242 = scalar_select %p241, %s20, 0
      %s243 = smul.addr %s242, 4
      %s244 = scalar_lea.vmem %s3, %s243
      %p245 = pneg %p133
      %p246 = pneg %p130
      %p247 = pneg %p163
      %p248 = pneg %p160
      %s249 = smul.u32 %s22, %s21
      %s250 = smul.u32 8, %s249
      %p251 = scmp.lt.s32.totalorder %s250, 7
      %s252 = scalar_select %p251, %s250, 7
      %p253 = scmp.lt.s32.totalorder %s20, 0
      %s254 = scalar_select %p253, %s20, 0
      %s255 = sadd.s32 %s254, %s252
      %s256 = smul.addr %s255, 8
      %s257 = scalar_lea.vmem %s4, %s256
      %s258 = smul.u32 8, %s22
      %p259 = scmp.lt.s32.totalorder %s258, 7
      %s260 = scalar_select %p259, %s258, 7
      %s261 = smul.addr %s260, 4
      %s262 = scalar_lea.vmem %s0, %s261
      %s263 = smul.u32 8, %s22
      %s264 = smul.u32 8, %s22
      %p265 = scmp.lt.s32.totalorder %s264, 7
      %s266 = scalar_select %p265, %s264, 7
      %s267 = smul.addr %s266, 4
      %s268 = scalar_lea.vmem %s1, %s267
      %s269 = smul.u32 8, %s22
      %p270 = scmp.lt.s32.totalorder %s20, 0
      %s271 = scalar_select %p270, %s20, 0
      %s272 = smul.addr %s271, 4
      %s273 = scalar_lea.vmem %s2, %s272
      %p274 = scmp.lt.s32.totalorder %s20, 0
      %s275 = scalar_select %p274, %s20, 0
      %s276 = smul.addr %s275, 4
      %s277 = scalar_lea.vmem %s3, %s276
      %s278 = smul.u32 %s22, %s21
      %s279 = smul.u32 8, %s278
      %p280 = scmp.lt.s32.totalorder %s279, 7
      %s281 = scalar_select %p280, %s279, 7
      %p282 = scmp.lt.s32.totalorder %s20, 0
      %s283 = scalar_select %p282, %s20, 0
      %s284 = sadd.s32 %s283, %s281
      %s285 = smul.addr %s284, 8
      %s286 = scalar_lea.vmem %s4, %s285
      %s287 = smul.u32 %s22, %s21
      %s288 = smul.u32 8, %s287
      %v290 = vld [vmem:[%s262] sm:$0xf]
      %v291 = vld [vmem:[%s262 + $0x4] sm:$0xf]
      %v292 = vld [vmem:[%s262 + $0x8] sm:$0xf]
      %v293 = vld [vmem:[%s262 + $0xc] sm:$0xf]
      %v294 = vld [vmem:[%s262 + $0x10] sm:$0xf]
      %v295 = vld [vmem:[%s262 + $0x14] sm:$0xf]
      %v296 = vld [vmem:[%s262 + $0x18] sm:$0xf]
      %v297 = vld [vmem:[%s262 + $0x1c] sm:$0xf]
      %v298 = vld [vmem:[%s273] sm:$0xf]
      %v299 = vld [vmem:[%s273 + $0x4] sm:$0xf]
      %v300 = vld [vmem:[%s273 + $0x8] sm:$0xf]
      %v301 = vld [vmem:[%s273 + $0xc] sm:$0xf]
      %v302 = vld [vmem:[%s273 + $0x10] sm:$0x3]
      %v303 = vld [vmem:[%s268] sm:$0xf]
      %v304 = vld [vmem:[%s268 + $0x4] sm:$0xf]
      %v305 = vld [vmem:[%s268 + $0x8] sm:$0xf]
      %v306 = vld [vmem:[%s268 + $0xc] sm:$0xf]
      %v307 = vld [vmem:[%s268 + $0x10] sm:$0xf]
      %v308 = vld [vmem:[%s268 + $0x14] sm:$0xf]
      %v309 = vld [vmem:[%s268 + $0x18] sm:$0xf]
      %v310 = vld [vmem:[%s268 + $0x1c] sm:$0xf]
      %v311 = vld [vmem:[%s277] sm:$0xf]
      %v312 = vld [vmem:[%s277 + $0x4] sm:$0xf]
      %v313 = vld [vmem:[%s277 + $0x8] sm:$0xf]
      %v314 = vld [vmem:[%s277 + $0xc] sm:$0xf]
      %v315 = vld [vmem:[%s277 + $0x10] sm:$0x3]
      %v324 = vunpack.c.l.b16 %v303
      %v325 = vunpack.c.l.b16 %v304
      %v326 = vunpack.c.l.b16 %v305
      %v327 = vunpack.c.l.b16 %v306
      %v328 = vunpack.c.l.b16 %v307
      %v329 = vunpack.c.l.b16 %v308
      %v330 = vunpack.c.l.b16 %v309
      %v331 = vunpack.c.l.b16 %v310
      %v332 = vpack.c.b16 %v325, %v324
      %v333 = vpack.c.b16 %v327, %v326
      %v334 = vpack.c.b16 %v329, %v328
      %v335 = vpack.c.b16 %v331, %v330
      %v341 = vunpack.c.l.b16 %v311
      %v342 = vunpack.c.l.b16 %v312
      %v343 = vunpack.c.l.b16 %v313
      %v344 = vunpack.c.l.b16 %v314
      %v345 = vunpack.c.l.b16 %v315
      %v346 = vpack.c.b16 %v342, %v341
      %v347 = vpack.c.b16 %v344, %v343
      %v348 = vpack.c.b16 %v345, %v345
      %vm351 = vcmask 285696
      %v353 = vsel %vm351, %v332, 0
      %v356 = vsel %vm351, %v333, 0
      %v359 = vsel %vm351, %v334, 0
      %v362 = vsel %vm351, %v335, 0
      %vm364 = vcmask 1040384
      %vm365 = vcmask 1041408
      %v366 = vsel %vm364, 4294967295, 65535
      %v367 = vsel %vm365, %v366, 0
      %v369 = vand.u32 %v348, %v367
      %371 = vmatprep.subr.bf16.mxu0 0
      %372 = vmatpush1.bf16.msra.mxu0 %v346
      %373 = vmatprep.subr.bf16.mxu0 0
      %374 = vmatpush1.bf16.msra.mxu0 %v347
      %375 = vmatprep.subr.bf16.mxu0 0
      %376 = vmatpush1.bf16.msra.mxu0 %v369
      %377 = vmatprep.subr.bf16.mxu0 0
      %378 = vmatpush1.bf16.msra.mxu0 0
      %379 = vmatprep.subr.bf16.mxu0 0
      %380 = vmatpush1.bf16.msra.mxu0 0
      %381 = vmatprep.subr.bf16.mxu0 0
      %382 = vmatpush1.bf16.msra.mxu0 0
      %383 = vmatprep.subr.bf16.mxu0 0
      %384 = vmatpush1.bf16.msra.mxu0 0
      %385 = vmatprep.subr.bf16.mxu0 0
      %386 = vmatpush1.bf16.msra.mxu0 0
      %387 = vmatprep.subr.bf16.mxu0 0
      %388 = vmatpush1.bf16.msra.mxu0 0
      %389 = vmatprep.subr.bf16.mxu0 0
      %390 = vmatpush1.bf16.msra.mxu0 0
      %391 = vmatprep.subr.bf16.mxu0 0
      %392 = vmatpush1.bf16.msra.mxu0 0
      %393 = vmatprep.subr.bf16.mxu0 0
      %394 = vmatpush1.bf16.msra.mxu0 0
      %395 = vmatprep.subr.bf16.mxu0 0
      %396 = vmatpush1.bf16.msra.mxu0 0
      %397 = vmatprep.subr.bf16.mxu0 0
      %398 = vmatpush1.bf16.msra.mxu0 0
      %399 = vmatprep.subr.bf16.mxu0 0
      %400 = vmatpush1.bf16.msra.mxu0 0
      %401 = vmatprep.subr.bf16.mxu0 0
      %402 = vmatpush1.bf16.msra.mxu0 0
      %403 = vmatprep.mubr.bf16.mxu0 0
      %404 = vmatmul.mubr.bf16.gmra.mrb[0].mxu0 %v353
      %v405 = vpop.f32.mrb[0].mxu0
      %v406 = vadd.f32 0.0, %v405
      %v407 = vpop.f32.mrb[0].mxu0
      %v408 = vpop.f32.mrb[0].mxu0
      %v409 = vadd.f32 0.0, %v408
      %v410 = vpop.f32.mrb[0].mxu0
      %411 = vmatprep.mubr.bf16.mxu0 0
      %412 = vmatmul.mubr.bf16.gmra.mrb[0].mxu0 %v356
      %v413 = vpop.f32.mrb[0].mxu0
      %v414 = vadd.f32 0.0, %v413
      %v415 = vpop.f32.mrb[0].mxu0
      %v416 = vpop.f32.mrb[0].mxu0
      %v417 = vadd.f32 0.0, %v416
      %v418 = vpop.f32.mrb[0].mxu0
      %419 = vmatprep.mubr.bf16.mxu0 0
      %420 = vmatmul.mubr.bf16.gmra.mrb[0].mxu0 %v359
      %v421 = vpop.f32.mrb[0].mxu0
      %v422 = vadd.f32 0.0, %v421
      %v423 = vpop.f32.mrb[0].mxu0
      %v424 = vpop.f32.mrb[0].mxu0
      %v425 = vadd.f32 0.0, %v424
      %v426 = vpop.f32.mrb[0].mxu0
      %427 = vmatprep.mubr.bf16.mxu0 0
      %428 = vmatmul.mubr.bf16.gmra.mrb[0].mxu0 %v362
      %v429 = vpop.f32.mrb[0].mxu0
      %v430 = vadd.f32 0.0, %v429
      %v431 = vpop.f32.mrb[0].mxu0
      %v432 = vpop.f32.mrb[0].mxu0
      %v433 = vadd.f32 0.0, %v432
      %v434 = vpop.f32.mrb[0].mxu0
      %435 = vdwg.mxu0
      %v444 = vunpack.c.l.b16 %v290
      %v445 = vunpack.c.l.b16 %v291
      %v446 = vunpack.c.l.b16 %v292
      %v447 = vunpack.c.l.b16 %v293
      %v448 = vunpack.c.l.b16 %v294
      %v449 = vunpack.c.l.b16 %v295
      %v450 = vunpack.c.l.b16 %v296
      %v451 = vunpack.c.l.b16 %v297
      %v452 = vpack.c.b16 %v445, %v444
      %v453 = vpack.c.b16 %v447, %v446
      %v454 = vpack.c.b16 %v449, %v448
      %v455 = vpack.c.b16 %v451, %v450
      %v461 = vunpack.c.l.b16 %v298
      %v462 = vunpack.c.l.b16 %v299
      %v463 = vunpack.c.l.b16 %v300
      %v464 = vunpack.c.l.b16 %v301
      %v465 = vunpack.c.l.b16 %v302
      %v466 = vpack.c.b16 %v462, %v461
      %v467 = vpack.c.b16 %v464, %v463
      %v468 = vpack.c.b16 %v465, %v465
      %v472 = vsel %vm351, %v452, 0
      %v475 = vsel %vm351, %v453, 0
      %v478 = vsel %vm351, %v454, 0
      %v481 = vsel %vm351, %v455, 0
      %v484 = vand.u32 %v468, %v367
      %486 = vmatprep.subr.bf16.mxu0 0
      %487 = vmatpush1.bf16.msra.mxu0 %v466
      %488 = vmatprep.subr.bf16.mxu0 0
      %489 = vmatpush1.bf16.msra.mxu0 %v467
      %490 = vmatprep.subr.bf16.mxu0 0
      %491 = vmatpush1.bf16.msra.mxu0 %v484
      %492 = vmatprep.subr.bf16.mxu0 0
      %493 = vmatpush1.bf16.msra.mxu0 0
      %494 = vmatprep.subr.bf16.mxu0 0
      %495 = vmatpush1.bf16.msra.mxu0 0
      %496 = vmatprep.subr.bf16.mxu0 0
      %497 = vmatpush1.bf16.msra.mxu0 0
      %498 = vmatprep.subr.bf16.mxu0 0
      %499 = vmatpush1.bf16.msra.mxu0 0
      %500 = vmatprep.subr.bf16.mxu0 0
      %501 = vmatpush1.bf16.msra.mxu0 0
      %502 = vmatprep.subr.bf16.mxu0 0
      %503 = vmatpush1.bf16.msra.mxu0 0
      %504 = vmatprep.subr.bf16.mxu0 0
      %505 = vmatpush1.bf16.msra.mxu0 0
      %506 = vmatprep.subr.bf16.mxu0 0
      %507 = vmatpush1.bf16.msra.mxu0 0
      %508 = vmatprep.subr.bf16.mxu0 0
      %509 = vmatpush1.bf16.msra.mxu0 0
      %510 = vmatprep.subr.bf16.mxu0 0
      %511 = vmatpush1.bf16.msra.mxu0 0
      %512 = vmatprep.subr.bf16.mxu0 0
      %513 = vmatpush1.bf16.msra.mxu0 0
      %514 = vmatprep.subr.bf16.mxu0 0
      %515 = vmatpush1.bf16.msra.mxu0 0
      %516 = vmatprep.subr.bf16.mxu0 0
      %517 = vmatpush1.bf16.msra.mxu0 0
      %518 = vmatprep.mubr.bf16.mxu0 0
      %519 = vmatmul.mubr.bf16.gmra.mrb[0].mxu0 %v472
      %v520 = vpop.f32.mrb[0].mxu0
      %v521 = vadd.f32 %v406, %v520
      %v522 = vpop.f32.mrb[0].mxu0
      %v523 = vpop.f32.mrb[0].mxu0
      %v524 = vadd.f32 %v409, %v523
      %v525 = vpop.f32.mrb[0].mxu0
      %526 = vmatprep.mubr.bf16.mxu0 0
      %527 = vmatmul.mubr.bf16.gmra.mrb[0].mxu0 %v475
      %v528 = vpop.f32.mrb[0].mxu0
      %v529 = vadd.f32 %v414, %v528
      %v530 = vpop.f32.mrb[0].mxu0
      %v531 = vpop.f32.mrb[0].mxu0
      %v532 = vadd.f32 %v417, %v531
      %v533 = vpop.f32.mrb[0].mxu0
      %534 = vmatprep.mubr.bf16.mxu0 0
      %535 = vmatmul.mubr.bf16.gmra.mrb[0].mxu0 %v478
      %v536 = vpop.f32.mrb[0].mxu0
      %v537 = vadd.f32 %v422, %v536
      %v538 = vpop.f32.mrb[0].mxu0
      %v539 = vpop.f32.mrb[0].mxu0
      %v540 = vadd.f32 %v425, %v539
      %v541 = vpop.f32.mrb[0].mxu0
      %542 = vmatprep.mubr.bf16.mxu0 0
      %543 = vmatmul.mubr.bf16.gmra.mrb[0].mxu0 %v481
      %v544 = vpop.f32.mrb[0].mxu0
      %v545 = vadd.f32 %v430, %v544
      %v546 = vpop.f32.mrb[0].mxu0
      %v547 = vpop.f32.mrb[0].mxu0
      %v548 = vadd.f32 %v433, %v547
      %v549 = vpop.f32.mrb[0].mxu0
      %550 = vdwg.mxu0
      %p551 = scmp.eq.s32.totalorder %s21, 0
      %p552 = scmp.eq.s32.totalorder %s22, 0
      %p553 = pnand %p551, %p552
      %p554 = pneg %p553
      // Predicated region
      $region37: #{encoder_forward.1} parent=35 // pred_check
        _
      $region38: #{encoder_forward.1} parent=35 // pred_check_branch
        %556 = sbr.rel (%p553) target = $region40
      $region39: #{encoder_forward.1} parent=35 // pred_region
        %557 = vst [vmem:[#allocation2] sm:$0x1] 0.0
        %558 = vst [vmem:[#allocation3] sm:$0x1] 0.0
      $region40: #{encoder_forward.1} parent=35 // pred_fallthru
        _
      // Predicated region
      $region41: #{encoder_forward.1} parent=35 // pred_check
        %p559 = pneg %p551
      $region42: #{encoder_forward.1} parent=35 // pred_check_branch
        %561 = sbr.rel (%p559) target = $region44
      $region43: #{encoder_forward.1} parent=35 // pred_region
        %v562 = vld [vmem:[#allocation2] sm:$0x1]
        %v563 = vadd.f32 %v521, %v524
        %v564 = vadd.f32 %v563, %v529
        %v565 = vadd.f32 %v564, %v532
        %v566 = vadd.f32 %v565, %v537
        %v567 = vadd.f32 %v566, %v540
        %v568 = vadd.f32 %v567, %v545
        %v569 = vadd.f32 %v568, %v548
        %v570 = vrot.slane %v569, 4
        %v571 = vadd.f32 %v569, %v570
        %v572 = vrot.slane %v571, 2
        %v573 = vadd.f32 %v571, %v572
        %v574 = vrot.slane %v573, 1
        %v575 = vadd.f32 %v573, %v574
        %v576 = vadd.f32 %v562, %v575
        %577 = vst [vmem:[#allocation2] sm:$0x1] %v576
        %v578 = vld [vmem:[#allocation3] sm:$0x1]
        %v579 = vmul.f32 %v521, %v521
        %v580 = vmul.f32 %v524, %v524
        %v581 = vmul.f32 %v529, %v529
        %v582 = vmul.f32 %v532, %v532
        %v583 = vmul.f32 %v537, %v537
        %v584 = vmul.f32 %v540, %v540
        %v585 = vmul.f32 %v545, %v545
        %v586 = vmul.f32 %v548, %v548
        %v587 = vadd.f32 %v579, %v580
        %v588 = vadd.f32 %v587, %v581
        %v589 = vadd.f32 %v588, %v582
        %v590 = vadd.f32 %v589, %v583
        %v591 = vadd.f32 %v590, %v584
        %v592 = vadd.f32 %v591, %v585
        %v593 = vadd.f32 %v592, %v586
        %v594 = vrot.slane %v593, 4
        %v595 = vadd.f32 %v593, %v594
        %v596 = vrot.slane %v595, 2
        %v597 = vadd.f32 %v595, %v596
        %v598 = vrot.slane %v597, 1
        %v599 = vadd.f32 %v597, %v598
        %v600 = vadd.f32 %v578, %v599
        %601 = vst [vmem:[#allocation3] sm:$0x1] %v600
      $region44: #{encoder_forward.1} parent=35 // pred_fallthru
        _
      %p602 = scmp.eq.s32.totalorder %s21, 1
      // Predicated region
      $region45: #{encoder_forward.1} parent=35 // pred_check
        %p603 = pneg %p602
      $region46: #{encoder_forward.1} parent=35 // pred_check_branch
        %605 = sbr.rel (%p603) target = $region48
      $region47: #{encoder_forward.1} parent=35 // pred_region
        %v606 = vld [vmem:[#allocation2] sm:$0x1]
        %v607 = vmul.f32 %v606, 0.016666668
        %v608 = vld [vmem:[#allocation3] sm:$0x1]
        %v609 = vmul.f32 %v608, 0.016666668
        %v610 = vmul.f32 %v607, %v607
        %v611 = vsub.f32 %v609, %v610
        %v613 = vlaneseq
        %v614 = vshrl.u32 %v613, 7
        %v615 = vsub.s32 0, %v614
        %v616 = vrot.slane %v607, %v615
        %v618 = vsub.f32 %v521, %v616
        %v619 = vsub.f32 %v524, %v616
        %v620 = vsub.f32 %v529, %v616
        %v621 = vsub.f32 %v532, %v616
        %v622 = vsub.f32 %v537, %v616
        %v623 = vsub.f32 %v540, %v616
        %v624 = vsub.f32 %v545, %v616
        %v625 = vsub.f32 %v548, %v616
        %v626 = vadd.f32 %v611, 1e-05
        %v627 = vrsqrt.pop %v626
        %v629 = vlaneseq
        %v630 = vshrl.u32 %v629, 7
        %v631 = vsub.s32 0, %v630
        %v632 = vrot.slane %v627, %v631
        %v634 = vmul.f32 %v618, %v632
        %v635 = vmul.f32 %v619, %v632
        %v636 = vmul.f32 %v620, %v632
        %v637 = vmul.f32 %v621, %v632
        %v638 = vmul.f32 %v622, %v632
        %v639 = vmul.f32 %v623, %v632
        %v640 = vmul.f32 %v624, %v632
        %v641 = vmul.f32 %v625, %v632
        %vm642 = vcmp.ge.f32.partialorder %v634, 0.0
        %vm643 = vcmp.ge.f32.partialorder %v635, 0.0
        %vm644 = vcmp.ge.f32.partialorder %v636, 0.0
        %vm645 = vcmp.ge.f32.partialorder %v637, 0.0
        %vm646 = vcmp.ge.f32.partialorder %v638, 0.0
        %vm647 = vcmp.ge.f32.partialorder %v639, 0.0
        %vm648 = vcmp.ge.f32.partialorder %v640, 0.0
        %vm649 = vcmp.ge.f32.partialorder %v641, 0.0
        %v650 = vmul.f32 %v634, 0.01
        %v651 = vmul.f32 %v635, 0.01
        %v652 = vmul.f32 %v636, 0.01
        %v653 = vmul.f32 %v637, 0.01
        %v654 = vmul.f32 %v638, 0.01
        %v655 = vmul.f32 %v639, 0.01
        %v656 = vmul.f32 %v640, 0.01
        %v657 = vmul.f32 %v641, 0.01
        %v658 = vsel %vm642, %v634, %v650
        %v659 = vsel %vm643, %v635, %v651
        %v660 = vsel %vm644, %v636, %v652
        %v661 = vsel %vm645, %v637, %v653
        %v662 = vsel %vm646, %v638, %v654
        %v663 = vsel %vm647, %v639, %v655
        %v664 = vsel %vm648, %v640, %v656
        %v665 = vsel %vm649, %v641, %v657
        %666 = vst [vmem:[%s286] sm:$0xff] %v658
        %667 = vst [vmem:[%s286 + $0x8] sm:$0xff] %v659
        %668 = vst [vmem:[%s286 + $0x10] sm:$0xff] %v660
        %669 = vst [vmem:[%s286 + $0x18] sm:$0xff] %v661
        %670 = vst [vmem:[%s286 + $0x20] sm:$0xff] %v662
        %671 = vst [vmem:[%s286 + $0x28] sm:$0xff] %v663
        %672 = vst [vmem:[%s286 + $0x30] sm:$0xff] %v664
        %673 = vst [vmem:[%s286 + $0x38] sm:$0xff] %v665
      $region48: #{encoder_forward.1} parent=35 // pred_fallthru
        _
      %s674 = smul.u32 %s22, %s21
      %s675 = smul.u32 8, %s674
      %p676 = scmp.lt.s32.totalorder %s675, 7
      %s677 = scalar_select %p676, %s675, 7
      %p678 = scmp.lt.s32.totalorder %s20, 0
      %s679 = scalar_select %p678, %s20, 0
      %s680 = sadd.s32 %s679, %s677
      %s681 = smul.addr %s680, 8
      %s682 = scalar_lea.vmem %s4, %s681
      // Predicated region
      $region49: #{encoder_forward.1} parent=35 // pred_check
        %p683 = pneg %p160
      $region50: #{encoder_forward.1} parent=35 // pred_check_branch
        %685 = sbr.rel (%p683) target = $region52
      $region51: #{encoder_forward.1} parent=35 // pred_region
        %s686 = smul.u32 %s22, %s21
        %s687 = smul.u32 8, %s686
      $region52: #{encoder_forward.1} parent=35 // pred_fallthru
        _
    $region36: #{encoder_forward.1} parent=5 // pred_fallthru
      _
    %p688 = scmp.le.s32.totalorder 2, %s10
    // Predicated region
    $region53: #{encoder_forward.1} parent=5 // pred_check
      %p689 = pneg %p688
    $region54: #{encoder_forward.1} parent=5 // pred_check_branch
      %691 = sbr.rel (%p689) target = $region56
    $region55: #{encoder_forward.1} parent=5 // pred_region
      %s692 = ssub.s32 %s10, 2
      // Predicated region
      $region57: #{encoder_forward.1} parent=55 // pred_check
        %p693 = pneg %p166
      $region58: #{encoder_forward.1} parent=55 // pred_check_branch
        %695 = sbr.rel (%p693) target = $region60
      $region59: #{encoder_forward.1} parent=55 // pred_region
        %s696 = smul.u32 %s25, %s24
        %s697 = smul.u32 8, %s696
        %p698 = scmp.lt.s32.totalorder %s697, 7
        %s699 = scalar_select %p698, %s697, 7
        %p700 = scmp.lt.s32.totalorder %s23, 0
        %s701 = scalar_select %p700, %s23, 0
        %s702 = sadd.s32 %s701, %s699
        %s703 = smul.addr %s702, 8
        %s704 = scalar_lea.vmem %s4, %s703
      $region60: #{encoder_forward.1} parent=55 // pred_fallthru
        _
    $region56: #{encoder_forward.1} parent=5 // pred_fallthru
      _
  $region6: #{encoder_forward.1} parent=0 // loop_footer
    %s14 = sadd.s32 1, %s10
  $region7: #{encoder_forward.1} parent=0 // loop_footer_branch
    %9 = sbr.rel target = $region3
  $region8: #{encoder_forward.1} parent=0 // loop_exit
    _

</llo_original>
